<compile_context>
chip_gen: v6e
topology: v6e:2x2x1
jax: 0.10.0
libtpu: 0.0.40
codegen_flags: <defaults>
</compile_context>

<pallas_src>
from functools import partial

import jax
import jax.numpy as jnp
from jax.experimental import pallas as pl
from jax.experimental.pallas import tpu as pltpu


# ------------------------------ Pallas kernel -------------------------------

def _contract_cnn_kernel(x_ref, swe_ref, swo_ref, w1_ref, b1_ref, w2_ref, b2_ref,
                         o_ref, *, batch, hp, kh, ho2):
    """Fused max_pool(2,2) -> conv3x3+ReLU -> conv3x3+ReLU for a batch block.

    x_ref  : (batch*H, W*Cin)        rows = (image, image row), lanes = (col, chan)
    swe_ref: (W*Cin, Wp*Cin)         0/1 gather of even image columns
    swo_ref: (W*Cin, Wp*Cin)         0/1 gather of odd  image columns
    w1_ref : (KH, Wp*Cin,  Wo1*Cout) per-dy banded conv1 GEMM weights
    b1_ref : (1, Wo1*Cout)           conv1 bias tiled over output columns
    w2_ref : (KH, Wo1*Cout, Wo2*Cout)
    b2_ref : (1, Wo2*Cout)
    o_ref  : (batch*Ho2, Wo2*Cout)
    """
    f32 = jnp.float32
    bhp = batch * hp

    # ---- 2x2 / stride-2 max-pool, H direction: strided sublane loads --------
    xe = x_ref[pl.ds(0, bhp, 2), :].astype(f32)        # image rows 0,2,4,...
    xo = x_ref[pl.ds(1, bhp, 2), :].astype(f32)        # image rows 1,3,5,...
    xh = jnp.maximum(xe, xo)                           # (B*Hp, W*Cin)

    # ---- W direction: two resident 0/1 column-gather matmuls ----------------
    a_even = jnp.dot(xh, swe_ref[...], preferred_element_type=f32)
    a_odd = jnp.dot(xh, swo_ref[...], preferred_element_type=f32)
    a0 = jnp.maximum(a_even, a_odd)                    # (B*Hp, Wp*Cin)

    # Rows of all images are stacked on the GEMM M axis. Per-dy slices below
    # cross image boundaries for the last (kh-1) rows of every image except the
    # last; those rows produce garbage that is simply never read back (conv2
    # only consumes valid conv1 rows) and never stored.

    # ---- conv1 (3x3 valid) + bias + ReLU: per-dy accumulating GEMMs ---------
    m1 = bhp - (kh - 1)
    h1 = jnp.dot(a0[0:m1, :], w1_ref[0], preferred_element_type=f32)
    for dy in range(1, kh):
        h1 = h1 + jnp.dot(a0[dy:dy + m1, :], w1_ref[dy],
                          preferred_element_type=f32)
    h1 = jnp.maximum(h1 + b1_ref[...], 0.0)            # (m1, Wo1*Cout)

    # ---- conv2 (3x3 valid) + bias + ReLU -------------------------------------
    m2 = m1 - (kh - 1)
    h2 = jnp.dot(h1[0:m2, :], w2_ref[0], preferred_element_type=f32)
    for dy in range(1, kh):
        h2 = h2 + jnp.dot(h1[dy:dy + m2, :], w2_ref[dy],
                          preferred_element_type=f32)
    h2 = jnp.maximum(h2 + b2_ref[...], 0.0)            # (m2, Wo2*Cout)

    # ---- store only the valid rows of every image ----------------------------
    # TODO(synk): batch_norm=True path (BatchNorm2d after each ReLU) not
    # implemented; the module default constructs it with batch_norm=False.
    for b in range(batch):
        o_ref[b * ho2:(b + 1) * ho2, :] = (
            h2[b * hp:b * hp + ho2, :].astype(o_ref.dtype))


# ------------------------------ Wrapper --------------------------------------

def _per_dy_conv_weights(w_oihw, w_in):
    """Torch conv weight (Cout,Cin,KH,KW) -> KH per-dy banded GEMM weights.

    Returns M of shape (KH, w_in*Cin, w_out*Cout) such that
      M[dy, w*Cin+ci, x*Cout+co] = w_oihw[co, ci, dy, w-x]  if 0 <= w-x < KW else 0
    so valid conv output rows are  sum_dy  A[y+dy, :] @ M[dy].
    Built with vectorized gathers only (no .at[].set() Python loops).
    """
    c_out, c_in, kh, kw = w_oihw.shape
    w_out = w_in - kw + 1
    dx = jnp.arange(w_in)[:, None] - jnp.arange(w_out)[None, :]    # (w_in, w_out)
    valid = (dx >= 0) & (dx < kw)
    g = w_oihw[:, :, :, jnp.clip(dx, 0, kw - 1)]       # (Cout, Cin, KH, w_in, w_out)
    g = jnp.where(valid[None, None, None], g, 0.0)
    m = jnp.transpose(g, (2, 3, 1, 4, 0))              # (KH, w_in, Cin, w_out, Cout)
    return m.reshape(kh, w_in * c_in, w_out * c_out).astype(jnp.float32)


def _pool_gather_mats(w, cin):
    """0/1 lane-gather matrices selecting even / odd image columns (chan-minor)."""
    wc, wp = w * cin, w // 2
    lane = jnp.arange(wc)[:, None]                     # (W*Cin, 1)
    col = jnp.arange(wp * cin)[None, :]                # (1, Wp*Cin)
    even_lane = 2 * (col // cin) * cin + (col % cin)
    s_we = (lane == even_lane).astype(jnp.float32)
    s_wo = (lane == even_lane + cin).astype(jnp.float32)
    return s_we, s_wo


def contract_cnn_forward(x_nchw, params):
    """ContractCNN forward (batch_norm=False path). x: (N, Cin, H, W) NCHW."""
    N, Cin, H, W = x_nchw.shape
    w1, b1, w2, b2 = params["w1"], params["b1"], params["w2"], params["b2"]
    Cout, _, KH, KW = w1.shape
    assert KH == KW and H % 2 == 0 and W % 2 == 0
    Hp, Wp = H // 2, W // 2
    Ho1, Wo1 = Hp - (KH - 1), Wp - (KW - 1)
    Ho2, Wo2 = Ho1 - (KH - 1), Wo1 - (KW - 1)

    # One-time parameter repack (tiny, vectorized).
    w1g = _per_dy_conv_weights(w1, Wp)                 # (KH, Wp*Cin,   Wo1*Cout)
    w2g = _per_dy_conv_weights(w2, Wo1)                # (KH, Wo1*Cout, Wo2*Cout)
    b1t = jnp.tile(b1, Wo1)[None, :]                   # (1, Wo1*Cout)
    b2t = jnp.tile(b2, Wo2)[None, :]                   # (1, Wo2*Cout)
    s_we, s_wo = _pool_gather_mats(W, Cin)             # (W*Cin, Wp*Cin) each

    # Boundary layout: NCHW -> rows = (batch, image row), lanes = (col, chan).
    # TODO(synk): at production sizes keep the whole UNet NHWC end-to-end so
    # these tiny boundary transposes disappear entirely.
    x_pk = jnp.transpose(x_nchw, (0, 2, 3, 1)).reshape(N * H, W * Cin)

    kern = partial(_contract_cnn_kernel, batch=N, hp=Hp, kh=KH, ho2=Ho2)
    c2 = lambda i: (0, 0)
    c3 = lambda i: (0, 0, 0)
    out2d = pl.pallas_call(
        kern,
        out_shape=jax.ShapeDtypeStruct((N * Ho2, Wo2 * Cout), x_nchw.dtype),
        grid=(1,),                                     # whole batch in one step
        in_specs=[
            pl.BlockSpec((N * H, W * Cin), c2),
            pl.BlockSpec((W * Cin, Wp * Cin), c2),
            pl.BlockSpec((W * Cin, Wp * Cin), c2),
            pl.BlockSpec((KH, Wp * Cin, Wo1 * Cout), c3),
            pl.BlockSpec((1, Wo1 * Cout), c2),
            pl.BlockSpec((KH, Wo1 * Cout, Wo2 * Cout), c3),
            pl.BlockSpec((1, Wo2 * Cout), c2),
        ],
        out_specs=pl.BlockSpec((N * Ho2, Wo2 * Cout), c2),
        compiler_params=pltpu.CompilerParams(
            dimension_semantics=("arbitrary",)),       # too little work to shard TCs
    )(x_pk, s_we, s_wo, w1g, b1t, w2g, b2t)

    # (N*Ho2, Wo2*Cout) channel-minor -> NCHW.
    return jnp.transpose(out2d.reshape(N, Ho2, Wo2, Cout), (0, 3, 1, 2))


# ------------------------- Pure-JAX reference --------------------------------

def _ref_forward(x_nchw, params):
    xp = jax.lax.reduce_window(x_nchw, -jnp.inf, jax.lax.max,
                               (1, 1, 2, 2), (1, 1, 2, 2), "VALID")
    dn = ("NCHW", "OIHW", "NCHW")
    y = jax.lax.conv_general_dilated(xp, params["w1"], (1, 1), "VALID",
                                     dimension_numbers=dn,
                                     precision=jax.lax.Precision.HIGHEST)
    y = jnp.maximum(y + params["b1"][None, :, None, None], 0.0)
    y = jax.lax.conv_general_dilated(y, params["w2"], (1, 1), "VALID",
                                     dimension_numbers=dn,
                                     precision=jax.lax.Precision.HIGHEST)
    y = jnp.maximum(y + params["b2"][None, :, None, None], 0.0)
    return y


# ---------------------------------- Main -------------------------------------

if __name__ == "__main__":
    N, Cin, Cout, H, W = 2, 4, 8, 16, 16

    key = jax.random.PRNGKey(0)
    k = jax.random.split(key, 5)
    # Parameters in the PyTorch layouts: conv weights OIHW, biases (Cout,).
    params = {
        "w1": 0.1 * jax.random.normal(k[0], (Cout, Cin, 3, 3), jnp.float32),
        "b1": 0.1 * jax.random.normal(k[1], (Cout,), jnp.float32),
        "w2": 0.1 * jax.random.normal(k[2], (Cout, Cout, 3, 3), jnp.float32),
        "b2": 0.1 * jax.random.normal(k[3], (Cout,), jnp.float32),
    }
    x = jax.random.normal(k[4], (N, Cin, H, W), jnp.float32)   # NCHW input

    out = jax.block_until_ready(contract_cnn_forward(x, params))
    ref = jax.block_until_ready(_ref_forward(x, params))

    assert out.shape == (N, Cout, H // 2 - 4, W // 2 - 4), out.shape
    assert jnp.allclose(out, ref, atol=2e-3, rtol=2e-3), float(
        jnp.max(jnp.abs(out - ref)))
    print("KERNEL_OK")
</pallas_src>

<mosaic_0001>
module attributes {stable_mosaic.version = 11 : i64} {
  func.func @_contract_cnn_kernel(%arg0: i32, %arg1: memref<32x64xf32, #tpu.memory_space<vmem>>, %arg2: memref<64x32xf32, #tpu.memory_space<vmem>>, %arg3: memref<64x32xf32, #tpu.memory_space<vmem>>, %arg4: memref<3x32x48xf32, #tpu.memory_space<vmem>>, %arg5: memref<1x48xf32, #tpu.memory_space<vmem>>, %arg6: memref<3x48x32xf32, #tpu.memory_space<vmem>>, %arg7: memref<1x32xf32, #tpu.memory_space<vmem>>, %arg8: memref<8x32xf32, #tpu.memory_space<vmem>>) attributes {dimension_semantics = [#tpu.dimension_semantics<arbitrary>], iteration_bounds = array<i64: 1>, scalar_prefetch = 0 : i64, scratch_operands = 0 : i64, tpu.core_type = #tpu.core_type<tc>, window_params = [{pipeline_mode = #tpu.pipeline_mode<synchronous>, transform_indices = @transform_0, window_bounds = array<i64: 32, 64>}, {pipeline_mode = #tpu.pipeline_mode<synchronous>, transform_indices = @transform_1, window_bounds = array<i64: 64, 32>}, {pipeline_mode = #tpu.pipeline_mode<synchronous>, transform_indices = @transform_2, window_bounds = array<i64: 64, 32>}, {pipeline_mode = #tpu.pipeline_mode<synchronous>, transform_indices = @transform_3, window_bounds = array<i64: 3, 32, 48>}, {pipeline_mode = #tpu.pipeline_mode<synchronous>, transform_indices = @transform_4, window_bounds = array<i64: 1, 48>}, {pipeline_mode = #tpu.pipeline_mode<synchronous>, transform_indices = @transform_5, window_bounds = array<i64: 3, 48, 32>}, {pipeline_mode = #tpu.pipeline_mode<synchronous>, transform_indices = @transform_6, window_bounds = array<i64: 1, 32>}, {pipeline_mode = #tpu.pipeline_mode<synchronous>, transform_indices = @transform_7, window_bounds = array<i64: 8, 32>}]} {
    %c0 = arith.constant 0 : index
    %c0_0 = arith.constant 0 : index
    %0 = tpu.strided_load %arg1[%c0, %c0_0] {strides = array<i32: 2, 1>} : memref<32x64xf32, #tpu.memory_space<vmem>>, vector<16x64xf32>
    %c1 = arith.constant 1 : index
    %c0_1 = arith.constant 0 : index
    %1 = tpu.strided_load %arg1[%c1, %c0_1] {strides = array<i32: 2, 1>} : memref<32x64xf32, #tpu.memory_space<vmem>>, vector<16x64xf32>
    %2 = arith.maximumf %0, %1 : vector<16x64xf32>
    %c0_2 = arith.constant 0 : index
    %c0_3 = arith.constant 0 : index
    %3 = vector.load %arg2[%c0_2, %c0_3] : memref<64x32xf32, #tpu.memory_space<vmem>>, vector<64x32xf32>
    %cst = arith.constant dense<0.000000e+00> : vector<16x32xf32>
    %4 = tpu.matmul %2, %3, %cst {dimension_numbers = #tpu.dot_dimension_numbers<[1], [0], [0], [1], [0, 0, 1, 1], [], []>} : vector<16x64xf32>, vector<64x32xf32>, vector<16x32xf32> -> vector<16x32xf32>
    %c0_4 = arith.constant 0 : index
    %c0_5 = arith.constant 0 : index
    %5 = vector.load %arg3[%c0_4, %c0_5] : memref<64x32xf32, #tpu.memory_space<vmem>>, vector<64x32xf32>
    %cst_6 = arith.constant dense<0.000000e+00> : vector<16x32xf32>
    %6 = tpu.matmul %2, %5, %cst_6 {dimension_numbers = #tpu.dot_dimension_numbers<[1], [0], [0], [1], [0, 0, 1, 1], [], []>} : vector<16x64xf32>, vector<64x32xf32>, vector<16x32xf32> -> vector<16x32xf32>
    %7 = arith.maximumf %4, %6 : vector<16x32xf32>
    %8 = vector.extract_strided_slice %7 {offsets = [0, 0], sizes = [14, 32], strides = [1, 1]} : vector<16x32xf32> to vector<14x32xf32>
    %c0_7 = arith.constant 0 : index
    %c0_8 = arith.constant 0 : index
    %c0_9 = arith.constant 0 : index
    %9 = vector.load %arg4[%c0_7, %c0_8, %c0_9] : memref<3x32x48xf32, #tpu.memory_space<vmem>>, vector<1x32x48xf32>
    %10 = vector.shape_cast %9 : vector<1x32x48xf32> to vector<32x48xf32>
    %cst_10 = arith.constant dense<0.000000e+00> : vector<14x48xf32>
    %11 = tpu.matmul %8, %10, %cst_10 {dimension_numbers = #tpu.dot_dimension_numbers<[1], [0], [0], [1], [0, 0, 1, 1], [], []>} : vector<14x32xf32>, vector<32x48xf32>, vector<14x48xf32> -> vector<14x48xf32>
    %12 = vector.extract_strided_slice %7 {offsets = [1, 0], sizes = [14, 32], strides = [1, 1]} : vector<16x32xf32> to vector<14x32xf32>
    %c1_11 = arith.constant 1 : index
    %c0_12 = arith.constant 0 : index
    %c0_13 = arith.constant 0 : index
    %13 = vector.load %arg4[%c1_11, %c0_12, %c0_13] : memref<3x32x48xf32, #tpu.memory_space<vmem>>, vector<1x32x48xf32>
    %14 = vector.shape_cast %13 : vector<1x32x48xf32> to vector<32x48xf32>
    %cst_14 = arith.constant dense<0.000000e+00> : vector<14x48xf32>
    %15 = tpu.matmul %12, %14, %cst_14 {dimension_numbers = #tpu.dot_dimension_numbers<[1], [0], [0], [1], [0, 0, 1, 1], [], []>} : vector<14x32xf32>, vector<32x48xf32>, vector<14x48xf32> -> vector<14x48xf32>
    %16 = arith.addf %11, %15 : vector<14x48xf32>
    %17 = vector.extract_strided_slice %7 {offsets = [2, 0], sizes = [14, 32], strides = [1, 1]} : vector<16x32xf32> to vector<14x32xf32>
    %c2 = arith.constant 2 : index
    %c0_15 = arith.constant 0 : index
    %c0_16 = arith.constant 0 : index
    %18 = vector.load %arg4[%c2, %c0_15, %c0_16] : memref<3x32x48xf32, #tpu.memory_space<vmem>>, vector<1x32x48xf32>
    %19 = vector.shape_cast %18 : vector<1x32x48xf32> to vector<32x48xf32>
    %cst_17 = arith.constant dense<0.000000e+00> : vector<14x48xf32>
    %20 = tpu.matmul %17, %19, %cst_17 {dimension_numbers = #tpu.dot_dimension_numbers<[1], [0], [0], [1], [0, 0, 1, 1], [], []>} : vector<14x32xf32>, vector<32x48xf32>, vector<14x48xf32> -> vector<14x48xf32>
    %21 = arith.addf %16, %20 : vector<14x48xf32>
    %c0_18 = arith.constant 0 : index
    %c0_19 = arith.constant 0 : index
    %22 = vector.load %arg5[%c0_18, %c0_19] : memref<1x48xf32, #tpu.memory_space<vmem>>, vector<1x48xf32>
    %23 = vector.broadcast %22 : vector<1x48xf32> to vector<14x48xf32>
    %24 = arith.addf %21, %23 : vector<14x48xf32>
    %cst_20 = arith.constant 0.000000e+00 : f32
    %25 = vector.broadcast %cst_20 : f32 to vector<14x48xf32>
    %26 = arith.maximumf %24, %25 : vector<14x48xf32>
    %27 = vector.extract_strided_slice %26 {offsets = [0, 0], sizes = [12, 48], strides = [1, 1]} : vector<14x48xf32> to vector<12x48xf32>
    %c0_21 = arith.constant 0 : index
    %c0_22 = arith.constant 0 : index
    %c0_23 = arith.constant 0 : index
    %28 = vector.load %arg6[%c0_21, %c0_22, %c0_23] : memref<3x48x32xf32, #tpu.memory_space<vmem>>, vector<1x48x32xf32>
    %29 = vector.shape_cast %28 : vector<1x48x32xf32> to vector<48x32xf32>
    %cst_24 = arith.constant dense<0.000000e+00> : vector<12x32xf32>
    %30 = tpu.matmul %27, %29, %cst_24 {dimension_numbers = #tpu.dot_dimension_numbers<[1], [0], [0], [1], [0, 0, 1, 1], [], []>} : vector<12x48xf32>, vector<48x32xf32>, vector<12x32xf32> -> vector<12x32xf32>
    %31 = vector.extract_strided_slice %26 {offsets = [1, 0], sizes = [12, 48], strides = [1, 1]} : vector<14x48xf32> to vector<12x48xf32>
    %c1_25 = arith.constant 1 : index
    %c0_26 = arith.constant 0 : index
    %c0_27 = arith.constant 0 : index
    %32 = vector.load %arg6[%c1_25, %c0_26, %c0_27] : memref<3x48x32xf32, #tpu.memory_space<vmem>>, vector<1x48x32xf32>
    %33 = vector.shape_cast %32 : vector<1x48x32xf32> to vector<48x32xf32>
    %cst_28 = arith.constant dense<0.000000e+00> : vector<12x32xf32>
    %34 = tpu.matmul %31, %33, %cst_28 {dimension_numbers = #tpu.dot_dimension_numbers<[1], [0], [0], [1], [0, 0, 1, 1], [], []>} : vector<12x48xf32>, vector<48x32xf32>, vector<12x32xf32> -> vector<12x32xf32>
    %35 = arith.addf %30, %34 : vector<12x32xf32>
    %36 = vector.extract_strided_slice %26 {offsets = [2, 0], sizes = [12, 48], strides = [1, 1]} : vector<14x48xf32> to vector<12x48xf32>
    %c2_29 = arith.constant 2 : index
    %c0_30 = arith.constant 0 : index
    %c0_31 = arith.constant 0 : index
    %37 = vector.load %arg6[%c2_29, %c0_30, %c0_31] : memref<3x48x32xf32, #tpu.memory_space<vmem>>, vector<1x48x32xf32>
    %38 = vector.shape_cast %37 : vector<1x48x32xf32> to vector<48x32xf32>
    %cst_32 = arith.constant dense<0.000000e+00> : vector<12x32xf32>
    %39 = tpu.matmul %36, %38, %cst_32 {dimension_numbers = #tpu.dot_dimension_numbers<[1], [0], [0], [1], [0, 0, 1, 1], [], []>} : vector<12x48xf32>, vector<48x32xf32>, vector<12x32xf32> -> vector<12x32xf32>
    %40 = arith.addf %35, %39 : vector<12x32xf32>
    %c0_33 = arith.constant 0 : index
    %c0_34 = arith.constant 0 : index
    %41 = vector.load %arg7[%c0_33, %c0_34] : memref<1x32xf32, #tpu.memory_space<vmem>>, vector<1x32xf32>
    %42 = vector.broadcast %41 : vector<1x32xf32> to vector<12x32xf32>
    %43 = arith.addf %40, %42 : vector<12x32xf32>
    %cst_35 = arith.constant 0.000000e+00 : f32
    %44 = vector.broadcast %cst_35 : f32 to vector<12x32xf32>
    %45 = arith.maximumf %43, %44 : vector<12x32xf32>
    %46 = vector.extract_strided_slice %45 {offsets = [0, 0], sizes = [4, 32], strides = [1, 1]} : vector<12x32xf32> to vector<4x32xf32>
    %c0_36 = arith.constant 0 : index
    %c0_37 = arith.constant 0 : index
    %47 = vector.load %arg8[%c0_36, %c0_37] : memref<8x32xf32, #tpu.memory_space<vmem>>, vector<4x32xf32>
    tpu.vector_store %arg8[%c0_36, %c0_37], %46 {strides = array<i32>} : memref<8x32xf32, #tpu.memory_space<vmem>>, vector<4x32xf32>,
    %48 = vector.extract_strided_slice %45 {offsets = [8, 0], sizes = [4, 32], strides = [1, 1]} : vector<12x32xf32> to vector<4x32xf32>
    %c4 = arith.constant 4 : index
    %c0_38 = arith.constant 0 : index
    %49 = vector.load %arg8[%c4, %c0_38] : memref<8x32xf32, #tpu.memory_space<vmem>>, vector<4x32xf32>
    tpu.vector_store %arg8[%c4, %c0_38], %48 {strides = array<i32>} : memref<8x32xf32, #tpu.memory_space<vmem>>, vector<4x32xf32>,
    return
  }
  func.func @transform_0(%arg0: i32) -> (i32, i32) {
    %c0_i32 = arith.constant 0 : i32
    %c0_i32_0 = arith.constant 0 : i32
    %c0_i32_1 = arith.constant 0 : i32
    return %c0_i32, %c0_i32_0 : i32, i32
  }
  func.func @transform_1(%arg0: i32) -> (i32, i32) {
    %c0_i32 = arith.constant 0 : i32
    %c0_i32_0 = arith.constant 0 : i32
    %c0_i32_1 = arith.constant 0 : i32
    return %c0_i32, %c0_i32_0 : i32, i32
  }
  func.func @transform_2(%arg0: i32) -> (i32, i32) {
    %c0_i32 = arith.constant 0 : i32
    %c0_i32_0 = arith.constant 0 : i32
    %c0_i32_1 = arith.constant 0 : i32
    return %c0_i32, %c0_i32_0 : i32, i32
  }
  func.func @transform_3(%arg0: i32) -> (i32, i32, i32) {
    %c0_i32 = arith.constant 0 : i32
    %c0_i32_0 = arith.constant 0 : i32
    %c0_i32_1 = arith.constant 0 : i32
    %c0_i32_2 = arith.constant 0 : i32
    return %c0_i32, %c0_i32_0, %c0_i32_1 : i32, i32, i32
  }
  func.func @transform_4(%arg0: i32) -> (i32, i32) {
    %c0_i32 = arith.constant 0 : i32
    %c0_i32_0 = arith.constant 0 : i32
    %c0_i32_1 = arith.constant 0 : i32
    return %c0_i32, %c0_i32_0 : i32, i32
  }
  func.func @transform_5(%arg0: i32) -> (i32, i32, i32) {
    %c0_i32 = arith.constant 0 : i32
    %c0_i32_0 = arith.constant 0 : i32
    %c0_i32_1 = arith.constant 0 : i32
    %c0_i32_2 = arith.constant 0 : i32
    return %c0_i32, %c0_i32_0, %c0_i32_1 : i32, i32, i32
  }
  func.func @transform_6(%arg0: i32) -> (i32, i32) {
    %c0_i32 = arith.constant 0 : i32
    %c0_i32_0 = arith.constant 0 : i32
    %c0_i32_1 = arith.constant 0 : i32
    return %c0_i32, %c0_i32_0 : i32, i32
  }
  func.func @transform_7(%arg0: i32) -> (i32, i32) {
    %c0_i32 = arith.constant 0 : i32
    %c0_i32_0 = arith.constant 0 : i32
    %c0_i32_1 = arith.constant 0 : i32
    return %c0_i32, %c0_i32_0 : i32, i32
  }
}

</mosaic_0001>

<llo_original>
// kernel: tpu_custom_call.1
$region0: #{tpu_custom_call.1}
  #allocation0 [shape = 'u32[]', space=smem, size = 0x4, offset = 0x4, fixed_abs, tag = 'smem constant byte address 0x4 - core index']
  #allocation1 [shape = 'u32[144,128]{1,0:T(1,128)}', space=vmem, size = 0x12000, scoped, tag = 'internal scratch']
  %s0 = inlined_call_operand.vmem [shape: f32[32,64], index: 0, kind: input, shape index: {}]
  %s1 = inlined_call_operand.vmem [shape: f32[64,32], index: 1, kind: input, shape index: {}]
  %s2 = inlined_call_operand.vmem [shape: f32[64,32], index: 2, kind: input, shape index: {}]
  %s3 = inlined_call_operand.vmem [shape: f32[3,32,48], index: 3, kind: input, shape index: {}]
  %s4 = inlined_call_operand.vmem [shape: f32[1,48], index: 4, kind: input, shape index: {}]
  %s5 = inlined_call_operand.vmem [shape: f32[3,48,32], index: 5, kind: input, shape index: {}]
  %s6 = inlined_call_operand.vmem [shape: f32[1,32], index: 6, kind: input, shape index: {}]
  %s7 = inlined_call_operand.hbm [shape: f32[8,32], index: 7, kind: output, shape index: {}]
  %s8 = sld [smem:[#allocation0]]
  $region38: #{tpu_custom_call.1} parent=0
    _
  %s10 = ssub.s32 1, %s8
  %s11 = scalar_select 0, %s10, %s8
  $region1: #{tpu_custom_call.1} parent=0
    #allocation2 [shape = 'u8[4096]{0}', space=vmem, size = 0x1000, scoped, tag = 'output window, operand 0, single buffered']
    #allocation3 [shape = 's32[1]{0}', space=sflag, size = 0x4, scoped, tag = 'scoped memory for tpu_custom_call.1']
    %12 = vsyncpa [#allocation3], 0
    // Predicated region
    $region2: #{tpu_custom_call.1} parent=1 // pred_check
      _
    $region3: #{tpu_custom_call.1} parent=1 // pred_check_branch
      %14 = sbr.rel (0) target = $region5
    $region4: #{tpu_custom_call.1} parent=1 // pred_region
      _
    $region5: #{tpu_custom_call.1} parent=1 // pred_fallthru
      _
    // Predicated region
    $region6: #{tpu_custom_call.1} parent=1 // pred_check
      _
    $region7: #{tpu_custom_call.1} parent=1 // pred_check_branch
      %16 = sbr.rel (0) target = $region9
    $region8: #{tpu_custom_call.1} parent=1 // pred_region
      _
    $region9: #{tpu_custom_call.1} parent=1 // pred_fallthru
      _
    // Predicated region
    $region10: #{tpu_custom_call.1} parent=1 // pred_check
      _
    $region11: #{tpu_custom_call.1} parent=1 // pred_check_branch
      %18 = sbr.rel (0) target = $region13
    $region12: #{tpu_custom_call.1} parent=1 // pred_region
      _
    $region13: #{tpu_custom_call.1} parent=1 // pred_fallthru
      _
    // Predicated region
    $region14: #{tpu_custom_call.1} parent=1 // pred_check
      _
    $region15: #{tpu_custom_call.1} parent=1 // pred_check_branch
      %20 = sbr.rel (0) target = $region17
    $region16: #{tpu_custom_call.1} parent=1 // pred_region
      _
    $region17: #{tpu_custom_call.1} parent=1 // pred_fallthru
      _
    // Predicated region
    $region18: #{tpu_custom_call.1} parent=1 // pred_check
      _
    $region19: #{tpu_custom_call.1} parent=1 // pred_check_branch
      %22 = sbr.rel (0) target = $region21
    $region20: #{tpu_custom_call.1} parent=1 // pred_region
      _
    $region21: #{tpu_custom_call.1} parent=1 // pred_fallthru
      _
    // Predicated region
    $region22: #{tpu_custom_call.1} parent=1 // pred_check
      _
    $region23: #{tpu_custom_call.1} parent=1 // pred_check_branch
      %24 = sbr.rel (0) target = $region25
    $region24: #{tpu_custom_call.1} parent=1 // pred_region
      _
    $region25: #{tpu_custom_call.1} parent=1 // pred_fallthru
      _
    // Predicated region
    $region26: #{tpu_custom_call.1} parent=1 // pred_check
      _
    $region27: #{tpu_custom_call.1} parent=1 // pred_check_branch
      %26 = sbr.rel (0) target = $region29
    $region28: #{tpu_custom_call.1} parent=1 // pred_region
      _
    $region29: #{tpu_custom_call.1} parent=1 // pred_fallthru
      _
    %v27 = vld [vmem:[%s0] ss:$2 sm:$0xff]
    %s28 = scalar_lea.vmem %s0, 16
    %v29 = vld [vmem:[%s28] ss:$2 sm:$0xff]
    %s30 = scalar_lea.vmem %s0, 1
    %v31 = vld [vmem:[%s30] ss:$2 sm:$0xff]
    %s32 = scalar_lea.vmem %s0, 17
    %v33 = vld [vmem:[%s32] ss:$2 sm:$0xff]
    %v34 = vmax.f32 %v27, %v31
    %v35 = vmax.f32 %v29, %v33
    %v36 = vld [vmem:[%s1] sm:$0xff]
    %v37 = vld [vmem:[%s1 + $0x8] sm:$0xff]
    %v38 = vld [vmem:[%s1 + $0x10] sm:$0xff]
    %v39 = vld [vmem:[%s1 + $0x18] sm:$0xff]
    %v40 = vld [vmem:[%s1 + $0x20] sm:$0xff]
    %v41 = vld [vmem:[%s1 + $0x28] sm:$0xff]
    %v42 = vld [vmem:[%s1 + $0x30] sm:$0xff]
    %v43 = vld [vmem:[%s1 + $0x38] sm:$0xff]
    %vm44 = vcmask 523264
    %v46 = vsel %vm44, %v34, 0
    %v49 = vsel %vm44, %v35, 0
    %51 = vmatprep.subr.mxu0 0.0
    %52 = vmatpush1.msra.mxu0 0.0
    %53 = vmatprep.subr.mxu0 0.0
    %54 = vmatpush1.msra.mxu0 0.0
    %55 = vmatprep.subr.mxu0 0.0
    %56 = vmatpush1.msra.mxu0 0.0
    %57 = vmatprep.subr.mxu0 0.0
    %58 = vmatpush1.msra.mxu0 0.0
    %59 = vmatprep.subr.mxu0 0.0
    %60 = vmatpush1.msra.mxu0 0.0
    %61 = vmatprep.subr.mxu0 0.0
    %62 = vmatpush1.msra.mxu0 0.0
    %63 = vmatprep.subr.mxu0 0.0
    %64 = vmatpush1.msra.mxu0 0.0
    %65 = vmatprep.subr.mxu0 0.0
    %66 = vmatpush1.msra.mxu0 0.0
    %67 = vmatprep.subr.mxu0 0.0
    %68 = vmatpush1.msra.mxu0 %v43
    %69 = vmatprep.subr.mxu0 0.0
    %70 = vmatpush1.msra.mxu0 %v42
    %71 = vmatprep.subr.mxu0 0.0
    %72 = vmatpush1.msra.mxu0 %v41
    %73 = vmatprep.subr.mxu0 0.0
    %74 = vmatpush1.msra.mxu0 %v40
    %75 = vmatprep.subr.mxu0 0.0
    %76 = vmatpush1.msra.mxu0 %v39
    %77 = vmatprep.subr.mxu0 0.0
    %78 = vmatpush1.msra.mxu0 %v38
    %79 = vmatprep.subr.mxu0 0.0
    %80 = vmatpush1.msra.mxu0 %v37
    %81 = vmatprep.subr.mxu0 0.0
    %82 = vmatpush1.msra.mxu0 %v36
    %83 = vmatprep.subr.mxu0 0.0
    %84 = vmatpush2.msra.mxu0 0.0
    %85 = vmatprep.subr.mxu0 0.0
    %86 = vmatpush2.msra.mxu0 0.0
    %87 = vmatprep.subr.mxu0 0.0
    %88 = vmatpush2.msra.mxu0 0.0
    %89 = vmatprep.subr.mxu0 0.0
    %90 = vmatpush2.msra.mxu0 0.0
    %91 = vmatprep.subr.mxu0 0.0
    %92 = vmatpush2.msra.mxu0 0.0
    %93 = vmatprep.subr.mxu0 0.0
    %94 = vmatpush2.msra.mxu0 0.0
    %95 = vmatprep.subr.mxu0 0.0
    %96 = vmatpush2.msra.mxu0 0.0
    %97 = vmatprep.subr.mxu0 0.0
    %98 = vmatpush2.msra.mxu0 0.0
    %99 = vmatprep.subr.mxu0 0.0
    %100 = vmatpush2.msra.mxu0 0.0
    %101 = vmatprep.subr.mxu0 0.0
    %102 = vmatpush2.msra.mxu0 0.0
    %103 = vmatprep.subr.mxu0 0.0
    %104 = vmatpush2.msra.mxu0 0.0
    %105 = vmatprep.subr.mxu0 0.0
    %106 = vmatpush2.msra.mxu0 0.0
    %107 = vmatprep.subr.mxu0 0.0
    %108 = vmatpush2.msra.mxu0 0.0
    %109 = vmatprep.subr.mxu0 0.0
    %110 = vmatpush2.msra.mxu0 0.0
    %111 = vmatprep.subr.mxu0 0.0
    %112 = vmatpush2.msra.mxu0 0.0
    %113 = vmatprep.subr.mxu0 0.0
    %114 = vmatpush2.msra.mxu0 0.0
    %115 = vmatprep.mubr.f32.mxu0 0.0
    %116 = vmatmul.mubr.f32.gmra.mxu0 %v46
    %v117 = vpop.f32.mrf.mxu0
    %v118 = vadd.f32 0.0, %v117
    %v119 = vpop.f32.mrf.mxu0
    %120 = vmatprep.mubr.f32.mxu0 0.0
    %121 = vmatmul.mubr.f32.gmra.mxu0 %v49
    %v122 = vpop.f32.mrf.mxu0
    %v123 = vadd.f32 0.0, %v122
    %v124 = vpop.f32.mrf.mxu0
    %125 = vdwg.mxu0
    %v126 = vld [vmem:[%s2] sm:$0xff]
    %v127 = vld [vmem:[%s2 + $0x8] sm:$0xff]
    %v128 = vld [vmem:[%s2 + $0x10] sm:$0xff]
    %v129 = vld [vmem:[%s2 + $0x18] sm:$0xff]
    %v130 = vld [vmem:[%s2 + $0x20] sm:$0xff]
    %v131 = vld [vmem:[%s2 + $0x28] sm:$0xff]
    %v132 = vld [vmem:[%s2 + $0x30] sm:$0xff]
    %v133 = vld [vmem:[%s2 + $0x38] sm:$0xff]
    %134 = vmatprep.subr.mxu0 0.0
    %135 = vmatpush1.msra.mxu0 0.0
    %136 = vmatprep.subr.mxu0 0.0
    %137 = vmatpush1.msra.mxu0 0.0
    %138 = vmatprep.subr.mxu0 0.0
    %139 = vmatpush1.msra.mxu0 0.0
    %140 = vmatprep.subr.mxu0 0.0
    %141 = vmatpush1.msra.mxu0 0.0
    %142 = vmatprep.subr.mxu0 0.0
    %143 = vmatpush1.msra.mxu0 0.0
    %144 = vmatprep.subr.mxu0 0.0
    %145 = vmatpush1.msra.mxu0 0.0
    %146 = vmatprep.subr.mxu0 0.0
    %147 = vmatpush1.msra.mxu0 0.0
    %148 = vmatprep.subr.mxu0 0.0
    %149 = vmatpush1.msra.mxu0 0.0
    %150 = vmatprep.subr.mxu0 0.0
    %151 = vmatpush1.msra.mxu0 %v133
    %152 = vmatprep.subr.mxu0 0.0
    %153 = vmatpush1.msra.mxu0 %v132
    %154 = vmatprep.subr.mxu0 0.0
    %155 = vmatpush1.msra.mxu0 %v131
    %156 = vmatprep.subr.mxu0 0.0
    %157 = vmatpush1.msra.mxu0 %v130
    %158 = vmatprep.subr.mxu0 0.0
    %159 = vmatpush1.msra.mxu0 %v129
    %160 = vmatprep.subr.mxu0 0.0
    %161 = vmatpush1.msra.mxu0 %v128
    %162 = vmatprep.subr.mxu0 0.0
    %163 = vmatpush1.msra.mxu0 %v127
    %164 = vmatprep.subr.mxu0 0.0
    %165 = vmatpush1.msra.mxu0 %v126
    %166 = vmatprep.subr.mxu0 0.0
    %167 = vmatpush2.msra.mxu0 0.0
    %168 = vmatprep.subr.mxu0 0.0
    %169 = vmatpush2.msra.mxu0 0.0
    %170 = vmatprep.subr.mxu0 0.0
    %171 = vmatpush2.msra.mxu0 0.0
    %172 = vmatprep.subr.mxu0 0.0
    %173 = vmatpush2.msra.mxu0 0.0
    %174 = vmatprep.subr.mxu0 0.0
    %175 = vmatpush2.msra.mxu0 0.0
    %176 = vmatprep.subr.mxu0 0.0
    %177 = vmatpush2.msra.mxu0 0.0
    %178 = vmatprep.subr.mxu0 0.0
    %179 = vmatpush2.msra.mxu0 0.0
    %180 = vmatprep.subr.mxu0 0.0
    %181 = vmatpush2.msra.mxu0 0.0
    %182 = vmatprep.subr.mxu0 0.0
    %183 = vmatpush2.msra.mxu0 0.0
    %184 = vmatprep.subr.mxu0 0.0
    %185 = vmatpush2.msra.mxu0 0.0
    %186 = vmatprep.subr.mxu0 0.0
    %187 = vmatpush2.msra.mxu0 0.0
    %188 = vmatprep.subr.mxu0 0.0
    %189 = vmatpush2.msra.mxu0 0.0
    %190 = vmatprep.subr.mxu0 0.0
    %191 = vmatpush2.msra.mxu0 0.0
    %192 = vmatprep.subr.mxu0 0.0
    %193 = vmatpush2.msra.mxu0 0.0
    %194 = vmatprep.subr.mxu0 0.0
    %195 = vmatpush2.msra.mxu0 0.0
    %196 = vmatprep.subr.mxu0 0.0
    %197 = vmatpush2.msra.mxu0 0.0
    %198 = vmatprep.mubr.f32.mxu0 0.0
    %199 = vmatmul.mubr.f32.gmra.mxu0 %v46
    %v200 = vpop.f32.mrf.mxu0
    %v201 = vadd.f32 0.0, %v200
    %v202 = vpop.f32.mrf.mxu0
    %203 = vmatprep.mubr.f32.mxu0 0.0
    %204 = vmatmul.mubr.f32.gmra.mxu0 %v49
    %v205 = vpop.f32.mrf.mxu0
    %v206 = vadd.f32 0.0, %v205
    %v207 = vpop.f32.mrf.mxu0
    %208 = vdwg.mxu0
    %v209 = vmax.f32 %v118, %v201
    %v210 = vmax.f32 %v123, %v206
    %v211 = vld [vmem:[%s3] sm:$0xff]
    %v212 = vld [vmem:[%s3 + $0x8] sm:$0xff]
    %v213 = vld [vmem:[%s3 + $0x10] sm:$0xff]
    %v214 = vld [vmem:[%s3 + $0x18] sm:$0xff]
    %s215 = scalar_lea.vmem %s3, 32
    %v216 = vld [vmem:[%s215] sm:$0xff]
    %v217 = vld [vmem:[%s215 + $0x8] sm:$0xff]
    %v218 = vld [vmem:[%s215 + $0x10] sm:$0xff]
    %v219 = vld [vmem:[%s215 + $0x18] sm:$0xff]
    %vm222 = vcmask 1046528
    %v223 = vrot.slane %v209, 1
    %v224 = vrot.slane %v210, 1
    %v225 = vsel %vm222, %v223, %v224
    %vm226 = vcmask 261120
    %v227 = vsel %vm226, %v225, 0
    %v229 = vsel %vm226, %v224, 0
    %231 = vmatprep.subr.mxu0 0.0
    %232 = vmatpush1.msra.mxu0 0.0
    %233 = vmatprep.subr.mxu0 0.0
    %234 = vmatpush1.msra.mxu0 0.0
    %235 = vmatprep.subr.mxu0 0.0
    %236 = vmatpush1.msra.mxu0 0.0
    %237 = vmatprep.subr.mxu0 0.0
    %238 = vmatpush1.msra.mxu0 0.0
    %239 = vmatprep.subr.mxu0 0.0
    %240 = vmatpush1.msra.mxu0 0.0
    %241 = vmatprep.subr.mxu0 0.0
    %242 = vmatpush1.msra.mxu0 0.0
    %243 = vmatprep.subr.mxu0 0.0
    %244 = vmatpush1.msra.mxu0 0.0
    %245 = vmatprep.subr.mxu0 0.0
    %246 = vmatpush1.msra.mxu0 0.0
    %247 = vmatprep.subr.mxu0 0.0
    %248 = vmatpush1.msra.mxu0 0.0
    %249 = vmatprep.subr.mxu0 0.0
    %250 = vmatpush1.msra.mxu0 0.0
    %251 = vmatprep.subr.mxu0 0.0
    %252 = vmatpush1.msra.mxu0 0.0
    %253 = vmatprep.subr.mxu0 0.0
    %254 = vmatpush1.msra.mxu0 0.0
    %255 = vmatprep.subr.mxu0 0.0
    %256 = vmatpush1.msra.mxu0 %v219
    %257 = vmatprep.subr.mxu0 0.0
    %258 = vmatpush1.msra.mxu0 %v218
    %259 = vmatprep.subr.mxu0 0.0
    %260 = vmatpush1.msra.mxu0 %v217
    %261 = vmatprep.subr.mxu0 0.0
    %262 = vmatpush1.msra.mxu0 %v216
    %263 = vmatprep.subr.mxu0 0.0
    %264 = vmatpush2.msra.mxu0 0.0
    %265 = vmatprep.subr.mxu0 0.0
    %266 = vmatpush2.msra.mxu0 0.0
    %267 = vmatprep.subr.mxu0 0.0
    %268 = vmatpush2.msra.mxu0 0.0
    %269 = vmatprep.subr.mxu0 0.0
    %270 = vmatpush2.msra.mxu0 0.0
    %271 = vmatprep.subr.mxu0 0.0
    %272 = vmatpush2.msra.mxu0 0.0
    %273 = vmatprep.subr.mxu0 0.0
    %274 = vmatpush2.msra.mxu0 0.0
    %275 = vmatprep.subr.mxu0 0.0
    %276 = vmatpush2.msra.mxu0 0.0
    %277 = vmatprep.subr.mxu0 0.0
    %278 = vmatpush2.msra.mxu0 0.0
    %279 = vmatprep.subr.mxu0 0.0
    %280 = vmatpush2.msra.mxu0 0.0
    %281 = vmatprep.subr.mxu0 0.0
    %282 = vmatpush2.msra.mxu0 0.0
    %283 = vmatprep.subr.mxu0 0.0
    %284 = vmatpush2.msra.mxu0 0.0
    %285 = vmatprep.subr.mxu0 0.0
    %286 = vmatpush2.msra.mxu0 0.0
    %287 = vmatprep.subr.mxu0 0.0
    %288 = vmatpush2.msra.mxu0 0.0
    %289 = vmatprep.subr.mxu0 0.0
    %290 = vmatpush2.msra.mxu0 0.0
    %291 = vmatprep.subr.mxu0 0.0
    %292 = vmatpush2.msra.mxu0 0.0
    %293 = vmatprep.subr.mxu0 0.0
    %294 = vmatpush2.msra.mxu0 0.0
    %295 = vmatprep.mubr.f32.mxu0 0.0
    %296 = vmatmul.mubr.f32.gmra.mxu0 %v227
    %v297 = vpop.f32.mrf.mxu0
    %v298 = vadd.f32 0.0, %v297
    %v299 = vpop.f32.mrf.mxu0
    %300 = vmatprep.mubr.f32.mxu0 0.0
    %301 = vmatmul.mubr.f32.gmra.mxu0 %v229
    %v302 = vpop.f32.mrf.mxu0
    %v303 = vadd.f32 0.0, %v302
    %v304 = vpop.f32.mrf.mxu0
    %305 = vdwg.mxu0
    %v306 = vsel %vm226, %v209, 0
    %v308 = vsel %vm226, %v210, 0
    %310 = vmatprep.subr.mxu0 0.0
    %311 = vmatpush1.msra.mxu0 0.0
    %312 = vmatprep.subr.mxu0 0.0
    %313 = vmatpush1.msra.mxu0 0.0
    %314 = vmatprep.subr.mxu0 0.0
    %315 = vmatpush1.msra.mxu0 0.0
    %316 = vmatprep.subr.mxu0 0.0
    %317 = vmatpush1.msra.mxu0 0.0
    %318 = vmatprep.subr.mxu0 0.0
    %319 = vmatpush1.msra.mxu0 0.0
    %320 = vmatprep.subr.mxu0 0.0
    %321 = vmatpush1.msra.mxu0 0.0
    %322 = vmatprep.subr.mxu0 0.0
    %323 = vmatpush1.msra.mxu0 0.0
    %324 = vmatprep.subr.mxu0 0.0
    %325 = vmatpush1.msra.mxu0 0.0
    %326 = vmatprep.subr.mxu0 0.0
    %327 = vmatpush1.msra.mxu0 0.0
    %328 = vmatprep.subr.mxu0 0.0
    %329 = vmatpush1.msra.mxu0 0.0
    %330 = vmatprep.subr.mxu0 0.0
    %331 = vmatpush1.msra.mxu0 0.0
    %332 = vmatprep.subr.mxu0 0.0
    %333 = vmatpush1.msra.mxu0 0.0
    %334 = vmatprep.subr.mxu0 0.0
    %335 = vmatpush1.msra.mxu0 %v214
    %336 = vmatprep.subr.mxu0 0.0
    %337 = vmatpush1.msra.mxu0 %v213
    %338 = vmatprep.subr.mxu0 0.0
    %339 = vmatpush1.msra.mxu0 %v212
    %340 = vmatprep.subr.mxu0 0.0
    %341 = vmatpush1.msra.mxu0 %v211
    %342 = vmatprep.subr.mxu0 0.0
    %343 = vmatpush2.msra.mxu0 0.0
    %344 = vmatprep.subr.mxu0 0.0
    %345 = vmatpush2.msra.mxu0 0.0
    %346 = vmatprep.subr.mxu0 0.0
    %347 = vmatpush2.msra.mxu0 0.0
    %348 = vmatprep.subr.mxu0 0.0
    %349 = vmatpush2.msra.mxu0 0.0
    %350 = vmatprep.subr.mxu0 0.0
    %351 = vmatpush2.msra.mxu0 0.0
    %352 = vmatprep.subr.mxu0 0.0
    %353 = vmatpush2.msra.mxu0 0.0
    %354 = vmatprep.subr.mxu0 0.0
    %355 = vmatpush2.msra.mxu0 0.0
    %356 = vmatprep.subr.mxu0 0.0
    %357 = vmatpush2.msra.mxu0 0.0
    %358 = vmatprep.subr.mxu0 0.0
    %359 = vmatpush2.msra.mxu0 0.0
    %360 = vmatprep.subr.mxu0 0.0
    %361 = vmatpush2.msra.mxu0 0.0
    %362 = vmatprep.subr.mxu0 0.0
    %363 = vmatpush2.msra.mxu0 0.0
    %364 = vmatprep.subr.mxu0 0.0
    %365 = vmatpush2.msra.mxu0 0.0
    %366 = vmatprep.subr.mxu0 0.0
    %367 = vmatpush2.msra.mxu0 0.0
    %368 = vmatprep.subr.mxu0 0.0
    %369 = vmatpush2.msra.mxu0 0.0
    %370 = vmatprep.subr.mxu0 0.0
    %371 = vmatpush2.msra.mxu0 0.0
    %372 = vmatprep.subr.mxu0 0.0
    %373 = vmatpush2.msra.mxu0 0.0
    %374 = vmatprep.mubr.f32.mxu0 0.0
    %375 = vmatmul.mubr.f32.gmra.mxu0 %v306
    %v376 = vpop.f32.mrf.mxu0
    %v377 = vadd.f32 %v298, %v376
    %v378 = vpop.f32.mrf.mxu0
    %379 = vmatprep.mubr.f32.mxu0 0.0
    %380 = vmatmul.mubr.f32.gmra.mxu0 %v308
    %v381 = vpop.f32.mrf.mxu0
    %v382 = vadd.f32 %v303, %v381
    %v383 = vpop.f32.mrf.mxu0
    %384 = vdwg.mxu0
    %s385 = scalar_lea.vmem %s3, 64
    %v386 = vld [vmem:[%s385] sm:$0xff]
    %v387 = vld [vmem:[%s385 + $0x8] sm:$0xff]
    %v388 = vld [vmem:[%s385 + $0x10] sm:$0xff]
    %v389 = vld [vmem:[%s385 + $0x18] sm:$0xff]
    %vm390 = vcmask 1045504
    %v391 = vrot.slane %v209, 2
    %v392 = vrot.slane %v210, 2
    %v393 = vsel %vm390, %v391, %v392
    %v394 = vsel %vm226, %v393, 0
    %v396 = vsel %vm226, %v392, 0
    %398 = vmatprep.subr.mxu0 0.0
    %399 = vmatpush1.msra.mxu0 0.0
    %400 = vmatprep.subr.mxu0 0.0
    %401 = vmatpush1.msra.mxu0 0.0
    %402 = vmatprep.subr.mxu0 0.0
    %403 = vmatpush1.msra.mxu0 0.0
    %404 = vmatprep.subr.mxu0 0.0
    %405 = vmatpush1.msra.mxu0 0.0
    %406 = vmatprep.subr.mxu0 0.0
    %407 = vmatpush1.msra.mxu0 0.0
    %408 = vmatprep.subr.mxu0 0.0
    %409 = vmatpush1.msra.mxu0 0.0
    %410 = vmatprep.subr.mxu0 0.0
    %411 = vmatpush1.msra.mxu0 0.0
    %412 = vmatprep.subr.mxu0 0.0
    %413 = vmatpush1.msra.mxu0 0.0
    %414 = vmatprep.subr.mxu0 0.0
    %415 = vmatpush1.msra.mxu0 0.0
    %416 = vmatprep.subr.mxu0 0.0
    %417 = vmatpush1.msra.mxu0 0.0
    %418 = vmatprep.subr.mxu0 0.0
    %419 = vmatpush1.msra.mxu0 0.0
    %420 = vmatprep.subr.mxu0 0.0
    %421 = vmatpush1.msra.mxu0 0.0
    %422 = vmatprep.subr.mxu0 0.0
    %423 = vmatpush1.msra.mxu0 %v389
    %424 = vmatprep.subr.mxu0 0.0
    %425 = vmatpush1.msra.mxu0 %v388
    %426 = vmatprep.subr.mxu0 0.0
    %427 = vmatpush1.msra.mxu0 %v387
    %428 = vmatprep.subr.mxu0 0.0
    %429 = vmatpush1.msra.mxu0 %v386
    %430 = vmatprep.subr.mxu0 0.0
    %431 = vmatpush2.msra.mxu0 0.0
    %432 = vmatprep.subr.mxu0 0.0
    %433 = vmatpush2.msra.mxu0 0.0
    %434 = vmatprep.subr.mxu0 0.0
    %435 = vmatpush2.msra.mxu0 0.0
    %436 = vmatprep.subr.mxu0 0.0
    %437 = vmatpush2.msra.mxu0 0.0
    %438 = vmatprep.subr.mxu0 0.0
    %439 = vmatpush2.msra.mxu0 0.0
    %440 = vmatprep.subr.mxu0 0.0
    %441 = vmatpush2.msra.mxu0 0.0
    %442 = vmatprep.subr.mxu0 0.0
    %443 = vmatpush2.msra.mxu0 0.0
    %444 = vmatprep.subr.mxu0 0.0
    %445 = vmatpush2.msra.mxu0 0.0
    %446 = vmatprep.subr.mxu0 0.0
    %447 = vmatpush2.msra.mxu0 0.0
    %448 = vmatprep.subr.mxu0 0.0
    %449 = vmatpush2.msra.mxu0 0.0
    %450 = vmatprep.subr.mxu0 0.0
    %451 = vmatpush2.msra.mxu0 0.0
    %452 = vmatprep.subr.mxu0 0.0
    %453 = vmatpush2.msra.mxu0 0.0
    %454 = vmatprep.subr.mxu0 0.0
    %455 = vmatpush2.msra.mxu0 0.0
    %456 = vmatprep.subr.mxu0 0.0
    %457 = vmatpush2.msra.mxu0 0.0
    %458 = vmatprep.subr.mxu0 0.0
    %459 = vmatpush2.msra.mxu0 0.0
    %460 = vmatprep.subr.mxu0 0.0
    %461 = vmatpush2.msra.mxu0 0.0
    %462 = vmatprep.mubr.f32.mxu0 0.0
    %463 = vmatmul.mubr.f32.gmra.mxu0 %v394
    %v464 = vpop.f32.mrf.mxu0
    %v465 = vadd.f32 0.0, %v464
    %v466 = vpop.f32.mrf.mxu0
    %467 = vmatprep.mubr.f32.mxu0 0.0
    %468 = vmatmul.mubr.f32.gmra.mxu0 %v396
    %v469 = vpop.f32.mrf.mxu0
    %v470 = vadd.f32 0.0, %v469
    %v471 = vpop.f32.mrf.mxu0
    %472 = vdwg.mxu0
    %v473 = vadd.f32 %v377, %v465
    %v474 = vadd.f32 %v382, %v470
    %v475 = vld [vmem:[%s4] sm:$0x1]
    %v477 = vlaneseq
    %v478 = vshrl.u32 %v477, 7
    %v479 = vsub.s32 0, %v478
    %v480 = vrot.slane %v475, %v479
    %v482 = vadd.f32 %v473, %v480
    %v483 = vadd.f32 %v474, %v480
    %v484 = vmax.f32 %v482, 0.0
    %v485 = vmax.f32 %v483, 0.0
    %v486 = vld [vmem:[%s5] sm:$0xff]
    %v487 = vld [vmem:[%s5 + $0x8] sm:$0xff]
    %v488 = vld [vmem:[%s5 + $0x10] sm:$0xff]
    %v489 = vld [vmem:[%s5 + $0x18] sm:$0xff]
    %v490 = vld [vmem:[%s5 + $0x20] sm:$0xff]
    %v491 = vld [vmem:[%s5 + $0x28] sm:$0xff]
    %s492 = scalar_lea.vmem %s5, 48
    %v493 = vld [vmem:[%s492] sm:$0xff]
    %v494 = vld [vmem:[%s492 + $0x8] sm:$0xff]
    %v495 = vld [vmem:[%s492 + $0x10] sm:$0xff]
    %v496 = vld [vmem:[%s492 + $0x18] sm:$0xff]
    %v497 = vld [vmem:[%s492 + $0x20] sm:$0xff]
    %v498 = vld [vmem:[%s492 + $0x28] sm:$0xff]
    %v501 = vrot.slane %v484, 1
    %v502 = vrot.slane %v485, 1
    %v503 = vsel %vm222, %v501, %v502
    %vm504 = vcmask 392192
    %v505 = vsel %vm504, %v503, 0
    %v507 = vsel %vm504, %v502, 0
    %509 = vmatprep.subr.mxu0 0.0
    %510 = vmatpush1.msra.mxu0 0.0
    %511 = vmatprep.subr.mxu0 0.0
    %512 = vmatpush1.msra.mxu0 0.0
    %513 = vmatprep.subr.mxu0 0.0
    %514 = vmatpush1.msra.mxu0 0.0
    %515 = vmatprep.subr.mxu0 0.0
    %516 = vmatpush1.msra.mxu0 0.0
    %517 = vmatprep.subr.mxu0 0.0
    %518 = vmatpush1.msra.mxu0 0.0
    %519 = vmatprep.subr.mxu0 0.0
    %520 = vmatpush1.msra.mxu0 0.0
    %521 = vmatprep.subr.mxu0 0.0
    %522 = vmatpush1.msra.mxu0 0.0
    %523 = vmatprep.subr.mxu0 0.0
    %524 = vmatpush1.msra.mxu0 0.0
    %525 = vmatprep.subr.mxu0 0.0
    %526 = vmatpush1.msra.mxu0 0.0
    %527 = vmatprep.subr.mxu0 0.0
    %528 = vmatpush1.msra.mxu0 0.0
    %529 = vmatprep.subr.mxu0 0.0
    %530 = vmatpush1.msra.mxu0 %v498
    %531 = vmatprep.subr.mxu0 0.0
    %532 = vmatpush1.msra.mxu0 %v497
    %533 = vmatprep.subr.mxu0 0.0
    %534 = vmatpush1.msra.mxu0 %v496
    %535 = vmatprep.subr.mxu0 0.0
    %536 = vmatpush1.msra.mxu0 %v495
    %537 = vmatprep.subr.mxu0 0.0
    %538 = vmatpush1.msra.mxu0 %v494
    %539 = vmatprep.subr.mxu0 0.0
    %540 = vmatpush1.msra.mxu0 %v493
    %541 = vmatprep.subr.mxu0 0.0
    %542 = vmatpush2.msra.mxu0 0.0
    %543 = vmatprep.subr.mxu0 0.0
    %544 = vmatpush2.msra.mxu0 0.0
    %545 = vmatprep.subr.mxu0 0.0
    %546 = vmatpush2.msra.mxu0 0.0
    %547 = vmatprep.subr.mxu0 0.0
    %548 = vmatpush2.msra.mxu0 0.0
    %549 = vmatprep.subr.mxu0 0.0
    %550 = vmatpush2.msra.mxu0 0.0
    %551 = vmatprep.subr.mxu0 0.0
    %552 = vmatpush2.msra.mxu0 0.0
    %553 = vmatprep.subr.mxu0 0.0
    %554 = vmatpush2.msra.mxu0 0.0
    %555 = vmatprep.subr.mxu0 0.0
    %556 = vmatpush2.msra.mxu0 0.0
    %557 = vmatprep.subr.mxu0 0.0
    %558 = vmatpush2.msra.mxu0 0.0
    %559 = vmatprep.subr.mxu0 0.0
    %560 = vmatpush2.msra.mxu0 0.0
    %561 = vmatprep.subr.mxu0 0.0
    %562 = vmatpush2.msra.mxu0 0.0
    %563 = vmatprep.subr.mxu0 0.0
    %564 = vmatpush2.msra.mxu0 0.0
    %565 = vmatprep.subr.mxu0 0.0
    %566 = vmatpush2.msra.mxu0 0.0
    %567 = vmatprep.subr.mxu0 0.0
    %568 = vmatpush2.msra.mxu0 0.0
    %569 = vmatprep.subr.mxu0 0.0
    %570 = vmatpush2.msra.mxu0 0.0
    %571 = vmatprep.subr.mxu0 0.0
    %572 = vmatpush2.msra.mxu0 0.0
    %573 = vmatprep.mubr.f32.mxu0 0.0
    %574 = vmatmul.mubr.f32.gmra.mxu0 %v505
    %v575 = vpop.f32.mrf.mxu0
    %v576 = vadd.f32 0.0, %v575
    %v577 = vpop.f32.mrf.mxu0
    %578 = vmatprep.mubr.f32.mxu0 0.0
    %579 = vmatmul.mubr.f32.gmra.mxu0 %v507
    %v580 = vpop.f32.mrf.mxu0
    %v581 = vadd.f32 0.0, %v580
    %v582 = vpop.f32.mrf.mxu0
    %583 = vdwg.mxu0
    %v584 = vsel %vm504, %v484, 0
    %v586 = vsel %vm504, %v485, 0
    %588 = vmatprep.subr.mxu0 0.0
    %589 = vmatpush1.msra.mxu0 0.0
    %590 = vmatprep.subr.mxu0 0.0
    %591 = vmatpush1.msra.mxu0 0.0
    %592 = vmatprep.subr.mxu0 0.0
    %593 = vmatpush1.msra.mxu0 0.0
    %594 = vmatprep.subr.mxu0 0.0
    %595 = vmatpush1.msra.mxu0 0.0
    %596 = vmatprep.subr.mxu0 0.0
    %597 = vmatpush1.msra.mxu0 0.0
    %598 = vmatprep.subr.mxu0 0.0
    %599 = vmatpush1.msra.mxu0 0.0
    %600 = vmatprep.subr.mxu0 0.0
    %601 = vmatpush1.msra.mxu0 0.0
    %602 = vmatprep.subr.mxu0 0.0
    %603 = vmatpush1.msra.mxu0 0.0
    %604 = vmatprep.subr.mxu0 0.0
    %605 = vmatpush1.msra.mxu0 0.0
    %606 = vmatprep.subr.mxu0 0.0
    %607 = vmatpush1.msra.mxu0 0.0
    %608 = vmatprep.subr.mxu0 0.0
    %609 = vmatpush1.msra.mxu0 %v491
    %610 = vmatprep.subr.mxu0 0.0
    %611 = vmatpush1.msra.mxu0 %v490
    %612 = vmatprep.subr.mxu0 0.0
    %613 = vmatpush1.msra.mxu0 %v489
    %614 = vmatprep.subr.mxu0 0.0
    %615 = vmatpush1.msra.mxu0 %v488
    %616 = vmatprep.subr.mxu0 0.0
    %617 = vmatpush1.msra.mxu0 %v487
    %618 = vmatprep.subr.mxu0 0.0
    %619 = vmatpush1.msra.mxu0 %v486
    %620 = vmatprep.subr.mxu0 0.0
    %621 = vmatpush2.msra.mxu0 0.0
    %622 = vmatprep.subr.mxu0 0.0
    %623 = vmatpush2.msra.mxu0 0.0
    %624 = vmatprep.subr.mxu0 0.0
    %625 = vmatpush2.msra.mxu0 0.0
    %626 = vmatprep.subr.mxu0 0.0
    %627 = vmatpush2.msra.mxu0 0.0
    %628 = vmatprep.subr.mxu0 0.0
    %629 = vmatpush2.msra.mxu0 0.0
    %630 = vmatprep.subr.mxu0 0.0
    %631 = vmatpush2.msra.mxu0 0.0
    %632 = vmatprep.subr.mxu0 0.0
    %633 = vmatpush2.msra.mxu0 0.0
    %634 = vmatprep.subr.mxu0 0.0
    %635 = vmatpush2.msra.mxu0 0.0
    %636 = vmatprep.subr.mxu0 0.0
    %637 = vmatpush2.msra.mxu0 0.0
    %638 = vmatprep.subr.mxu0 0.0
    %639 = vmatpush2.msra.mxu0 0.0
    %640 = vmatprep.subr.mxu0 0.0
    %641 = vmatpush2.msra.mxu0 0.0
    %642 = vmatprep.subr.mxu0 0.0
    %643 = vmatpush2.msra.mxu0 0.0
    %644 = vmatprep.subr.mxu0 0.0
    %645 = vmatpush2.msra.mxu0 0.0
    %646 = vmatprep.subr.mxu0 0.0
    %647 = vmatpush2.msra.mxu0 0.0
    %648 = vmatprep.subr.mxu0 0.0
    %649 = vmatpush2.msra.mxu0 0.0
    %650 = vmatprep.subr.mxu0 0.0
    %651 = vmatpush2.msra.mxu0 0.0
    %652 = vmatprep.mubr.f32.mxu0 0.0
    %653 = vmatmul.mubr.f32.gmra.mxu0 %v584
    %v654 = vpop.f32.mrf.mxu0
    %v655 = vadd.f32 %v576, %v654
    %v656 = vpop.f32.mrf.mxu0
    %657 = vmatprep.mubr.f32.mxu0 0.0
    %658 = vmatmul.mubr.f32.gmra.mxu0 %v586
    %v659 = vpop.f32.mrf.mxu0
    %v660 = vadd.f32 %v581, %v659
    %v661 = vpop.f32.mrf.mxu0
    %662 = vdwg.mxu0
    %s663 = scalar_lea.vmem %s5, 96
    %v664 = vld [vmem:[%s663] sm:$0xff]
    %v665 = vld [vmem:[%s663 + $0x8] sm:$0xff]
    %v666 = vld [vmem:[%s663 + $0x10] sm:$0xff]
    %v667 = vld [vmem:[%s663 + $0x18] sm:$0xff]
    %v668 = vld [vmem:[%s663 + $0x20] sm:$0xff]
    %v669 = vld [vmem:[%s663 + $0x28] sm:$0xff]
    %v670 = vrot.slane %v484, 2
    %v671 = vrot.slane %v485, 2
    %v672 = vsel %vm390, %v670, %v671
    %v673 = vsel %vm504, %v672, 0
    %v675 = vsel %vm504, %v671, 0
    %677 = vmatprep.subr.mxu0 0.0
    %678 = vmatpush1.msra.mxu0 0.0
    %679 = vmatprep.subr.mxu0 0.0
    %680 = vmatpush1.msra.mxu0 0.0
    %681 = vmatprep.subr.mxu0 0.0
    %682 = vmatpush1.msra.mxu0 0.0
    %683 = vmatprep.subr.mxu0 0.0
    %684 = vmatpush1.msra.mxu0 0.0
    %685 = vmatprep.subr.mxu0 0.0
    %686 = vmatpush1.msra.mxu0 0.0
    %687 = vmatprep.subr.mxu0 0.0
    %688 = vmatpush1.msra.mxu0 0.0
    %689 = vmatprep.subr.mxu0 0.0
    %690 = vmatpush1.msra.mxu0 0.0
    %691 = vmatprep.subr.mxu0 0.0
    %692 = vmatpush1.msra.mxu0 0.0
    %693 = vmatprep.subr.mxu0 0.0
    %694 = vmatpush1.msra.mxu0 0.0
    %695 = vmatprep.subr.mxu0 0.0
    %696 = vmatpush1.msra.mxu0 0.0
    %697 = vmatprep.subr.mxu0 0.0
    %698 = vmatpush1.msra.mxu0 %v669
    %699 = vmatprep.subr.mxu0 0.0
    %700 = vmatpush1.msra.mxu0 %v668
    %701 = vmatprep.subr.mxu0 0.0
    %702 = vmatpush1.msra.mxu0 %v667
    %703 = vmatprep.subr.mxu0 0.0
    %704 = vmatpush1.msra.mxu0 %v666
    %705 = vmatprep.subr.mxu0 0.0
    %706 = vmatpush1.msra.mxu0 %v665
    %707 = vmatprep.subr.mxu0 0.0
    %708 = vmatpush1.msra.mxu0 %v664
    %709 = vmatprep.subr.mxu0 0.0
    %710 = vmatpush2.msra.mxu0 0.0
    %711 = vmatprep.subr.mxu0 0.0
    %712 = vmatpush2.msra.mxu0 0.0
    %713 = vmatprep.subr.mxu0 0.0
    %714 = vmatpush2.msra.mxu0 0.0
    %715 = vmatprep.subr.mxu0 0.0
    %716 = vmatpush2.msra.mxu0 0.0
    %717 = vmatprep.subr.mxu0 0.0
    %718 = vmatpush2.msra.mxu0 0.0
    %719 = vmatprep.subr.mxu0 0.0
    %720 = vmatpush2.msra.mxu0 0.0
    %721 = vmatprep.subr.mxu0 0.0
    %722 = vmatpush2.msra.mxu0 0.0
    %723 = vmatprep.subr.mxu0 0.0
    %724 = vmatpush2.msra.mxu0 0.0
    %725 = vmatprep.subr.mxu0 0.0
    %726 = vmatpush2.msra.mxu0 0.0
    %727 = vmatprep.subr.mxu0 0.0
    %728 = vmatpush2.msra.mxu0 0.0
    %729 = vmatprep.subr.mxu0 0.0
    %730 = vmatpush2.msra.mxu0 0.0
    %731 = vmatprep.subr.mxu0 0.0
    %732 = vmatpush2.msra.mxu0 0.0
    %733 = vmatprep.subr.mxu0 0.0
    %734 = vmatpush2.msra.mxu0 0.0
    %735 = vmatprep.subr.mxu0 0.0
    %736 = vmatpush2.msra.mxu0 0.0
    %737 = vmatprep.subr.mxu0 0.0
    %738 = vmatpush2.msra.mxu0 0.0
    %739 = vmatprep.subr.mxu0 0.0
    %740 = vmatpush2.msra.mxu0 0.0
    %741 = vmatprep.mubr.f32.mxu0 0.0
    %742 = vmatmul.mubr.f32.gmra.mxu0 %v673
    %v743 = vpop.f32.mrf.mxu0
    %v744 = vadd.f32 0.0, %v743
    %v745 = vpop.f32.mrf.mxu0
    %746 = vmatprep.mubr.f32.mxu0 0.0
    %747 = vmatmul.mubr.f32.gmra.mxu0 %v675
    %v748 = vpop.f32.mrf.mxu0
    %v749 = vadd.f32 0.0, %v748
    %v750 = vpop.f32.mrf.mxu0
    %751 = vdwg.mxu0
    %v752 = vadd.f32 %v655, %v744
    %v753 = vadd.f32 %v660, %v749
    %v754 = vld [vmem:[%s6] sm:$0x1]
    %v756 = vlaneseq
    %v757 = vshrl.u32 %v756, 7
    %v758 = vsub.s32 0, %v757
    %v759 = vrot.slane %v754, %v758
    %v761 = vadd.f32 %v752, %v759
    %v762 = vadd.f32 %v753, %v759
    %v763 = vmax.f32 %v761, 0.0
    %v764 = vmax.f32 %v762, 0.0
    %vm765 = vcmask 257024
    %766 = vst.msk [vmem:[#allocation2] sm:$0xf] %vm765, %v763
    %767 = vst.msk [vmem:[#allocation2 + $0x4] sm:$0xf] %vm765, %v764
    // Predicated region
    $region30: #{tpu_custom_call.1} parent=1 // pred_check
      _
    $region31: #{tpu_custom_call.1} parent=1 // pred_check_branch
      %769 = sbr.rel (0) target = $region33
    $region32: #{tpu_custom_call.1} parent=1 // pred_region
      %s771 = ssub.s32 128, 128
      %772 = vsyncadd [#allocation3], %s771
      %s774 = sshll.u32 [#allocation2], 4
      %s775 = int_to_ptr.vmem [resolvable:$true] %s774
      %777 = dma.vmem_to_hbm [thread:$0]  %s775, 128, %s7, [#allocation3]
    $region33: #{tpu_custom_call.1} parent=1 // pred_fallthru
      _
    // Predicated region
    $region34: #{tpu_custom_call.1} parent=1 // pred_check
      _
    $region35: #{tpu_custom_call.1} parent=1 // pred_check_branch
      %779 = sbr.rel (0) target = $region37
    $region36: #{tpu_custom_call.1} parent=1 // pred_region
      %780 = dma.done [#allocation3], 128
    $region37: #{tpu_custom_call.1} parent=1 // pred_fallthru
      _
    %781 = vsyncpa [#allocation3], 1

</llo_original>
